<compile_context>
chip_gen: v7x
topology: tpu7x:2x2x1
jax: 0.10.0
libtpu: 0.0.40
codegen_flags: <defaults>
</compile_context>

<pallas_src>
import functools

import jax
import jax.numpy as jnp
from jax.experimental import pallas as pl
from jax.experimental.pallas import tpu as pltpu

GAMMA = 1.5
ALPHA = 0.25
LANE = 128
SUB = 8                       # f32 sublanes -> (8, 128) vreg-shaped accumulator
MAX_ROW_TILE = 1024           # (1024,128) f32 tile = 512 KiB; 2 in x 2 bufs = 2 MiB VMEM


def _focal_loss_kernel(pred_ref, true_ref, out_ref, *, gamma, alpha):
    """Elementwise focal loss on one tile; accumulates an (8,128) partial sum."""
    i = pl.program_id(1)

    @pl.when(i == 0)
    def _():
        out_ref[...] = jnp.zeros_like(out_ref)

    x = pred_ref[...].astype(jnp.float32)
    t = true_ref[...].astype(jnp.float32)

    # One exp shared between the numerically-stable BCE and the sigmoid.
    e = jnp.exp(-jnp.abs(x))
    # BCEWithLogits (reduction='none'): max(x,0) - x*t + log(1 + exp(-|x|))
    bce = jnp.maximum(x, 0.0) - x * t + jnp.log1p(e)

    # sigmoid(x) = where(x>=0, 1/(1+e), e/(1+e)); approx reciprocal + one
    # Newton refinement keeps full f32 accuracy while staying off the EUP
    # divide path (refinement is VALU-only).
    denom = 1.0 + e
    r = pl.reciprocal(denom, approx=True)
    r = r * (2.0 - denom * r)
    pred_prob = jnp.where(x >= 0.0, r, e * r)

    p_t = t * pred_prob + (1.0 - t) * (1.0 - pred_prob)
    alpha_factor = t * alpha + (1.0 - t) * (1.0 - alpha)
    z = 1.0 - p_t
    if gamma == 1.5:                     # compile-time specialization
        modulating_factor = z * jnp.sqrt(z)
    else:                                # generic fallback
        modulating_factor = jnp.power(z, gamma)
    loss = bce * alpha_factor * modulating_factor

    # Vector accumulator: per-step VALU adds only; the expensive cross-lane
    # reduce is done exactly once (outside the kernel, on the tiny output).
    out_ref[...] += loss.reshape(-1, SUB, LANE).sum(axis=0)


def _choose_row_tile(rows):
    if rows <= MAX_ROW_TILE:
        return rows                      # tiny input: single whole-array block
    for t in (1024, 512, 256, 128, 64, 32, 16, 8):
        if rows % t == 0:
            return t
    raise ValueError("row count must be a multiple of 8")


def focal_loss(pred, true, gamma=GAMMA, alpha=ALPHA):
    """FocalLoss(BCEWithLogitsLoss(reduction='mean')).forward via Pallas."""
    assert pred.shape == true.shape
    total = pred.size
    assert total % (SUB * LANE) == 0, "pad inputs to a multiple of 8*128"

    rows = total // LANE
    pred2d = pred.reshape(rows, LANE)
    true2d = true.reshape(rows, LANE)

    row_tile = _choose_row_tile(rows)
    steps = rows // row_tile
    # Two independent partial sums when possible -> leading 'parallel' axis
    # can shard across the two v7x TensorCores (harmless on v5e/v6e).
    if steps % 2 == 0:
        n_splits, inner = 2, steps // 2
    else:
        n_splits, inner = 1, steps

    kernel = functools.partial(_focal_loss_kernel, gamma=gamma, alpha=alpha)

    partial_sums = pl.pallas_call(
        kernel,
        out_shape=jax.ShapeDtypeStruct((n_splits * SUB, LANE), jnp.float32),
        grid_spec=pltpu.PrefetchScalarGridSpec(
            num_scalar_prefetch=0,
            grid=(n_splits, inner),
            in_specs=[
                pl.BlockSpec((row_tile, LANE), lambda c, i: (c * inner + i, 0)),
                pl.BlockSpec((row_tile, LANE), lambda c, i: (c * inner + i, 0)),
            ],
            out_specs=pl.BlockSpec((SUB, LANE), lambda c, i: (c, 0)),
        ),
        compiler_params=pltpu.CompilerParams(
            dimension_semantics=("parallel", "arbitrary")),
    )(pred2d, true2d)

    # Final (tiny) cross-lane reduce + mean; reduction='mean' of the module.
    return jnp.sum(partial_sums) / jnp.float32(total)


def focal_loss_ref(pred, true, gamma=GAMMA, alpha=ALPHA):
    """Pure-JAX reference matching the PyTorch module."""
    x = pred.astype(jnp.float32)
    t = true.astype(jnp.float32)
    bce = jnp.maximum(x, 0.0) - x * t + jnp.log1p(jnp.exp(-jnp.abs(x)))
    p = jax.nn.sigmoid(x)
    p_t = t * p + (1.0 - t) * (1.0 - p)
    alpha_factor = t * alpha + (1.0 - t) * (1.0 - alpha)
    mod = (1.0 - p_t) ** gamma
    return jnp.mean(bce * alpha_factor * mod)


if __name__ == "__main__":
    key = jax.random.PRNGKey(0)
    k1, k2 = jax.random.split(key)
    # NCHW logits and binary targets, small shapes.
    pred = jax.random.normal(k1, (2, 4, 16, 16), dtype=jnp.float32) * 2.0
    true = (jax.random.uniform(k2, (2, 4, 16, 16)) > 0.5).astype(jnp.float32)

    out = focal_loss(pred, true)
    jax.block_until_ready(out)

    ref = focal_loss_ref(pred, true)
    assert jnp.allclose(out, ref, atol=1e-5, rtol=1e-5), (out, ref)
    print("KERNEL_OK")
</pallas_src>

<mosaic_0001>
module attributes {stable_mosaic.version = 11 : i64} {
  func.func @_focal_loss_kernel(%arg0: i32, %arg1: i32, %arg2: memref<16x128xf32, #tpu.memory_space<vmem>>, %arg3: memref<16x128xf32, #tpu.memory_space<vmem>>, %arg4: memref<8x128xf32, #tpu.memory_space<vmem>>) attributes {dimension_semantics = [#tpu.dimension_semantics<parallel>, #tpu.dimension_semantics<arbitrary>], iteration_bounds = array<i64: 1, 1>, scalar_prefetch = 0 : i64, scratch_operands = 0 : i64, tpu.core_type = #tpu.core_type<tc>, window_params = [{transform_indices = @transform_0, window_bounds = array<i64: 16, 128>}, {transform_indices = @transform_1, window_bounds = array<i64: 16, 128>}, {transform_indices = @transform_2, window_bounds = array<i64: 8, 128>}]} {
    %c0_i32 = arith.constant 0 : i32
    %0 = arith.cmpi eq, %arg1, %c0_i32 : i32
    %1 = arith.extui %0 : i1 to i32
    %c0_i32_0 = arith.constant 0 : i32
    %2 = arith.cmpi ne, %1, %c0_i32_0 : i32
    scf.if %2 {
      %cst_19 = arith.constant 0.000000e+00 : f32
      %51 = vector.broadcast %cst_19 : f32 to vector<8x128xf32>
      %c0_20 = arith.constant 0 : index
      %c0_21 = arith.constant 0 : index
      %52 = vector.load %arg4[%c0_20, %c0_21] : memref<8x128xf32, #tpu.memory_space<vmem>>, vector<8x128xf32>
      tpu.vector_store %arg4[%c0_20, %c0_21], %51 {strides = array<i32>} : memref<8x128xf32, #tpu.memory_space<vmem>>, vector<8x128xf32>,
    } else {
    }
    %c0 = arith.constant 0 : index
    %c0_1 = arith.constant 0 : index
    %3 = vector.load %arg2[%c0, %c0_1] : memref<16x128xf32, #tpu.memory_space<vmem>>, vector<16x128xf32>
    %c0_2 = arith.constant 0 : index
    %c0_3 = arith.constant 0 : index
    %4 = vector.load %arg3[%c0_2, %c0_3] : memref<16x128xf32, #tpu.memory_space<vmem>>, vector<16x128xf32>
    %5 = math.absf %3 : vector<16x128xf32>
    %cst = arith.constant 0.000000e+00 : f32
    %6 = vector.broadcast %cst : f32 to vector<16x128xf32>
    %7 = arith.subf %6, %5 : vector<16x128xf32>
    %8 = math.exp %7 : vector<16x128xf32>
    %cst_4 = arith.constant 0.000000e+00 : f32
    %9 = vector.broadcast %cst_4 : f32 to vector<16x128xf32>
    %10 = arith.maximumf %3, %9 : vector<16x128xf32>
    %11 = arith.mulf %3, %4 : vector<16x128xf32>
    %12 = arith.subf %10, %11 : vector<16x128xf32>
    %13 = math.log1p %8 : vector<16x128xf32>
    %14 = arith.addf %12, %13 : vector<16x128xf32>
    %cst_5 = arith.constant 1.000000e+00 : f32
    %15 = vector.broadcast %cst_5 : f32 to vector<16x128xf32>
    %16 = arith.addf %15, %8 : vector<16x128xf32>
    %17 = tpu.reciprocal %16 {approx = true} : vector<16x128xf32> -> vector<16x128xf32>
    %18 = arith.mulf %16, %17 : vector<16x128xf32>
    %cst_6 = arith.constant 2.000000e+00 : f32
    %19 = vector.broadcast %cst_6 : f32 to vector<16x128xf32>
    %20 = arith.subf %19, %18 : vector<16x128xf32>
    %21 = arith.mulf %17, %20 : vector<16x128xf32>
    %cst_7 = arith.constant 0.000000e+00 : f32
    %22 = vector.broadcast %cst_7 : f32 to vector<16x128xf32>
    %23 = arith.cmpf oge, %3, %22 : vector<16x128xf32>
    %24 = arith.mulf %8, %21 : vector<16x128xf32>
    %25 = arith.select %23, %21, %24 : vector<16x128xi1>, vector<16x128xf32>
    %26 = arith.mulf %4, %25 : vector<16x128xf32>
    %cst_8 = arith.constant 1.000000e+00 : f32
    %27 = vector.broadcast %cst_8 : f32 to vector<16x128xf32>
    %28 = arith.subf %27, %4 : vector<16x128xf32>
    %cst_9 = arith.constant 1.000000e+00 : f32
    %29 = vector.broadcast %cst_9 : f32 to vector<16x128xf32>
    %30 = arith.subf %29, %25 : vector<16x128xf32>
    %31 = arith.mulf %28, %30 : vector<16x128xf32>
    %32 = arith.addf %26, %31 : vector<16x128xf32>
    %cst_10 = arith.constant 2.500000e-01 : f32
    %33 = vector.broadcast %cst_10 : f32 to vector<16x128xf32>
    %34 = arith.mulf %4, %33 : vector<16x128xf32>
    %cst_11 = arith.constant 1.000000e+00 : f32
    %35 = vector.broadcast %cst_11 : f32 to vector<16x128xf32>
    %36 = arith.subf %35, %4 : vector<16x128xf32>
    %cst_12 = arith.constant 7.500000e-01 : f32
    %37 = vector.broadcast %cst_12 : f32 to vector<16x128xf32>
    %38 = arith.mulf %36, %37 : vector<16x128xf32>
    %39 = arith.addf %34, %38 : vector<16x128xf32>
    %cst_13 = arith.constant 1.000000e+00 : f32
    %40 = vector.broadcast %cst_13 : f32 to vector<16x128xf32>
    %41 = arith.subf %40, %32 : vector<16x128xf32>
    %42 = math.sqrt %41 : vector<16x128xf32>
    %43 = arith.mulf %41, %42 : vector<16x128xf32>
    %44 = arith.mulf %14, %39 : vector<16x128xf32>
    %45 = arith.mulf %44, %43 : vector<16x128xf32>
    %c0_14 = arith.constant 0 : index
    %c0_15 = arith.constant 0 : index
    %46 = vector.load %arg4[%c0_14, %c0_15] : memref<8x128xf32, #tpu.memory_space<vmem>>, vector<8x128xf32>
    %47 = vector.shape_cast %45 : vector<16x128xf32> to vector<2x8x128xf32>
    %cst_16 = arith.constant dense<0.000000e+00> : vector<8x128xf32>
    %48 = vector.multi_reduction <add>, %47, %cst_16 [0] : vector<2x8x128xf32> to vector<8x128xf32>
    %49 = arith.addf %46, %48 : vector<8x128xf32>
    %c0_17 = arith.constant 0 : index
    %c0_18 = arith.constant 0 : index
    %50 = vector.load %arg4[%c0_17, %c0_18] : memref<8x128xf32, #tpu.memory_space<vmem>>, vector<8x128xf32>
    tpu.vector_store %arg4[%c0_17, %c0_18], %49 {strides = array<i32>} : memref<8x128xf32, #tpu.memory_space<vmem>>, vector<8x128xf32>,
    return
  }
  func.func @transform_0(%arg0: i32, %arg1: i32) -> (i32, i32) {
    %c1_i32 = arith.constant 1 : i32
    %0 = arith.muli %arg0, %c1_i32 : i32
    %1 = arith.addi %0, %arg1 : i32
    %c0_i32 = arith.constant 0 : i32
    %c0_i32_0 = arith.constant 0 : i32
    return %1, %c0_i32 : i32, i32
  }
  func.func @transform_1(%arg0: i32, %arg1: i32) -> (i32, i32) {
    %c1_i32 = arith.constant 1 : i32
    %0 = arith.muli %arg0, %c1_i32 : i32
    %1 = arith.addi %0, %arg1 : i32
    %c0_i32 = arith.constant 0 : i32
    %c0_i32_0 = arith.constant 0 : i32
    return %1, %c0_i32 : i32, i32
  }
  func.func @transform_2(%arg0: i32, %arg1: i32) -> (i32, i32) {
    %c0_i32 = arith.constant 0 : i32
    %c0_i32_0 = arith.constant 0 : i32
    return %arg0, %c0_i32 : i32, i32
  }
}

</mosaic_0001>

<llo_original>
// kernel: tpu_custom_call.1
$region0: #{tpu_custom_call.1}
  #allocation0 [shape = 'u32[]', space=smem, size = 0x4, offset = 0x4, fixed_abs, tag = 'smem constant byte address 0x4 - core index']
  #allocation1 [shape = 'u32[144,128]{1,0:T(1,128)}', space=vmem, size = 0x12000, scoped, tag = 'internal scratch']
  %s0 = inlined_call_operand.hbm [shape: f32[16,128], index: 0, kind: input, shape index: {}]
  %s1 = inlined_call_operand.hbm [shape: f32[16,128], index: 1, kind: input, shape index: {}]
  %s2 = inlined_call_operand.hbm [shape: f32[8,128], index: 2, kind: output, shape index: {}]
  %s3 = sld [smem:[#allocation0]]
  $region30: #{tpu_custom_call.1} parent=0
    _
  %s5 = ssub.s32 1, %s3
  %s6 = scalar_select 0, %s5, %s3
  $region1: #{tpu_custom_call.1} parent=0
    #allocation2 [shape = 'u8[8192]{0}', space=vmem, size = 0x2000, scoped, tag = 'input window, operand 0, single buffered']
    #allocation3 [shape = 's32[1]{0}', space=sflag, size = 0x4, scoped, tag = 'scoped memory for tpu_custom_call.1']
    #allocation4 [shape = 's32[1]{0}', space=sflag, size = 0x4, scoped, tag = 'scoped memory for tpu_custom_call.1']
    #allocation5 [shape = 'u8[8192]{0}', space=vmem, size = 0x2000, scoped, tag = 'input window, operand 1, single buffered']
    #allocation6 [shape = 's32[1]{0}', space=sflag, size = 0x4, scoped, tag = 'scoped memory for tpu_custom_call.1']
    #allocation7 [shape = 'u8[4096]{0}', space=vmem, size = 0x1000, scoped, tag = 'output window, operand 0, single buffered']
    %7 = vsyncpa [#allocation3], 0
    %8 = vsyncpa [#allocation6], 0
    %9 = vsyncpa [#allocation4], 0
    // Predicated region
    $region2: #{tpu_custom_call.1} parent=1 // pred_check
      _
    $region3: #{tpu_custom_call.1} parent=1 // pred_check_branch
      %11 = sbr.rel (0) target = $region5
    $region4: #{tpu_custom_call.1} parent=1 // pred_region
      %s12 = sadd.s32 0, 0
      %s13 = smul.u32 2, %s12
      %s15 = ssub.s32 256, 256
      %16 = vsyncadd [#allocation3], %s15
      %s17 = smul.addr %s13, 128
      %s18 = scalar_lea.hbm %s0, %s17
      %s19 = sshll.u32 [#allocation2], 4
      %s20 = int_to_ptr.vmem [resolvable:$true] %s19
      %25 = dma.hbm_to_vmem [thread:$0]  %s18, 256, %s20, [#allocation3], 128, 128, 8
    $region5: #{tpu_custom_call.1} parent=1 // pred_fallthru
      _
    // Predicated region
    $region6: #{tpu_custom_call.1} parent=1 // pred_check
      _
    $region7: #{tpu_custom_call.1} parent=1 // pred_check_branch
      %27 = sbr.rel (0) target = $region9
    $region8: #{tpu_custom_call.1} parent=1 // pred_region
      %s28 = sadd.s32 0, 0
      %s29 = smul.u32 2, %s28
      %s31 = ssub.s32 256, 256
      %32 = vsyncadd [#allocation6], %s31
      %s33 = smul.addr %s29, 128
      %s34 = scalar_lea.hbm %s1, %s33
      %s35 = sshll.u32 [#allocation5], 4
      %s36 = int_to_ptr.vmem [resolvable:$true] %s35
      %41 = dma.hbm_to_vmem [thread:$0]  %s34, 256, %s36, [#allocation6], 128, 128, 8
    $region9: #{tpu_custom_call.1} parent=1 // pred_fallthru
      _
    // Predicated region
    $region10: #{tpu_custom_call.1} parent=1 // pred_check
      _
    $region11: #{tpu_custom_call.1} parent=1 // pred_check_branch
      %43 = sbr.rel (0) target = $region13
    $region12: #{tpu_custom_call.1} parent=1 // pred_region
      %44 = dma.done [#allocation3], 256
    $region13: #{tpu_custom_call.1} parent=1 // pred_fallthru
      _
    // Predicated region
    $region14: #{tpu_custom_call.1} parent=1 // pred_check
      _
    $region15: #{tpu_custom_call.1} parent=1 // pred_check_branch
      %46 = sbr.rel (0) target = $region17
    $region16: #{tpu_custom_call.1} parent=1 // pred_region
      %47 = dma.done [#allocation6], 256
    $region17: #{tpu_custom_call.1} parent=1 // pred_fallthru
      _
    %s48 = sadd.s32 0, 0
    %s49 = smul.u32 2, %s48
    %s50 = sadd.s32 0, 0
    %s51 = smul.u32 2, %s50
    %p52 = scmp.eq.s32.totalorder 0, 0
    // Predicated region
    $region18: #{tpu_custom_call.1} parent=1 // pred_check
      %p53 = pneg %p52
    $region19: #{tpu_custom_call.1} parent=1 // pred_check_branch
      %55 = sbr.rel (%p53) target = $region21
    $region20: #{tpu_custom_call.1} parent=1 // pred_region
      %56 = vst [vmem:[#allocation7] sm:$0xff] 0.0
    $region21: #{tpu_custom_call.1} parent=1 // pred_fallthru
      _
    %v57 = vld [vmem:[#allocation2] sm:$0xff]
    %v58 = vld [vmem:[#allocation2 + $0x8] sm:$0xff]
    %v59 = vld [vmem:[#allocation5] sm:$0xff]
    %v60 = vld [vmem:[#allocation5 + $0x8] sm:$0xff]
    %v61 = vand.u32 2147483647, %v57
    %v62 = vand.u32 2147483647, %v58
    %v63 = vsub.f32 0.0, %v61
    %v64 = vsub.f32 0.0, %v62
    %v65 = vmul.f32 %v63, 1.442695
    %v66 = vpow.pop %v65
    %v67 = vmul.f32 %v64, 1.442695
    %v68 = vpow.pop %v67
    %v69 = vmax.f32 %v57, 0.0
    %v70 = vmax.f32 %v58, 0.0
    %v71 = vmul.f32 %v57, %v59
    %v72 = vmul.f32 %v58, %v60
    %v73 = vsub.f32 %v69, %v71
    %v74 = vsub.f32 %v70, %v72
    %v75 = vadd.f32 %v66, 1.0
    %v76 = vlog2.pop %v75
    %v77 = vmul.f32 %v76, 0.6931472
    %v78 = vmul.f32 -0.5, %v66
    %v79 = vadd.f32 %v78, 1.0
    %v80 = vmul.f32 %v79, %v66
    %v81 = vand.u32 2147483647, %v66
    %vm82 = vcmp.lt.f32.partialorder %v81, 0.0004427343
    %v83 = vsel %vm82, %v80, %v77
    %v84 = vadd.f32 %v68, 1.0
    %v85 = vlog2.pop %v84
    %v86 = vmul.f32 %v85, 0.6931472
    %v87 = vmul.f32 -0.5, %v68
    %v88 = vadd.f32 %v87, 1.0
    %v89 = vmul.f32 %v88, %v68
    %v90 = vand.u32 2147483647, %v68
    %vm91 = vcmp.lt.f32.partialorder %v90, 0.0004427343
    %v92 = vsel %vm91, %v89, %v86
    %v93 = vadd.f32 %v73, %v83
    %v94 = vadd.f32 %v74, %v92
    %v95 = vadd.f32 %v66, 1.0
    %v96 = vadd.f32 %v68, 1.0
    %v97 = vrcp.pop %v95
    %v98 = vrcp.pop %v96
    %v99 = vmul.f32 %v95, %v97
    %v100 = vmul.f32 %v96, %v98
    %v101 = vsub.f32 2.0, %v99
    %v102 = vsub.f32 2.0, %v100
    %v103 = vmul.f32 %v97, %v101
    %v104 = vmul.f32 %v98, %v102
    %vm105 = vcmp.ge.f32.partialorder %v57, 0.0
    %vm106 = vcmp.ge.f32.partialorder %v58, 0.0
    %v107 = vmul.f32 %v66, %v103
    %v108 = vmul.f32 %v68, %v104
    %v109 = vsel %vm105, %v103, %v107
    %v110 = vsel %vm106, %v104, %v108
    %v111 = vmul.f32 %v59, %v109
    %v112 = vmul.f32 %v60, %v110
    %v113 = vsub.f32 1.0, %v59
    %v114 = vsub.f32 1.0, %v60
    %v115 = vsub.f32 1.0, %v109
    %v116 = vsub.f32 1.0, %v110
    %v117 = vmul.f32 %v113, %v115
    %v118 = vmul.f32 %v114, %v116
    %v119 = vadd.f32 %v111, %v117
    %v120 = vadd.f32 %v112, %v118
    %v121 = vmul.f32 %v59, 0.25
    %v122 = vmul.f32 %v60, 0.25
    %v123 = vmul.f32 %v113, 0.75
    %v124 = vmul.f32 %v114, 0.75
    %v125 = vadd.f32 %v121, %v123
    %v126 = vadd.f32 %v122, %v124
    %v127 = vsub.f32 1.0, %v119
    %v128 = vsub.f32 1.0, %v120
    %v129 = vrsqrt.pop %v127
    %v130 = vmul.f32 %v127, %v129
    %vm131 = vcmp.eq.f32.partialorder %v127, inf
    %v132 = vsel %vm131, %v127, %v130
    %vm133 = vcmp.eq.f32.partialorder %v127, 0.0
    %v134 = vand.u32 %v127, 2147483648
    %v135 = vsel %vm133, %v134, %v132
    %v136 = vrsqrt.pop %v128
    %v137 = vmul.f32 %v128, %v136
    %vm138 = vcmp.eq.f32.partialorder %v128, inf
    %v139 = vsel %vm138, %v128, %v137
    %vm140 = vcmp.eq.f32.partialorder %v128, 0.0
    %v141 = vand.u32 %v128, 2147483648
    %v142 = vsel %vm140, %v141, %v139
    %v143 = vmul.f32 %v127, %v135
    %v144 = vmul.f32 %v128, %v142
    %v145 = vmul.f32 %v93, %v125
    %v146 = vmul.f32 %v94, %v126
    %v147 = vmul.f32 %v145, %v143
    %v148 = vmul.f32 %v146, %v144
    %v149 = vld [vmem:[#allocation7] sm:$0xff]
    %v150 = vadd.f32 %v147, %v148
    %v151 = vadd.f32 %v149, %v150
    %152 = vst [vmem:[#allocation7] sm:$0xff] %v151
    // Predicated region
    $region22: #{tpu_custom_call.1} parent=1 // pred_check
      _
    $region23: #{tpu_custom_call.1} parent=1 // pred_check_branch
      %154 = sbr.rel (0) target = $region25
    $region24: #{tpu_custom_call.1} parent=1 // pred_region
      %s156 = ssub.s32 128, 128
      %157 = vsyncadd [#allocation4], %s156
      %s159 = sshll.u32 [#allocation7], 4
      %s160 = int_to_ptr.vmem [resolvable:$true] %s159
      %162 = dma.vmem_to_hbm [thread:$0]  %s160, 128, %s2, [#allocation4]
    $region25: #{tpu_custom_call.1} parent=1 // pred_fallthru
      _
    // Predicated region
    $region26: #{tpu_custom_call.1} parent=1 // pred_check
      _
    $region27: #{tpu_custom_call.1} parent=1 // pred_check_branch
      %164 = sbr.rel (0) target = $region29
    $region28: #{tpu_custom_call.1} parent=1 // pred_region
      %165 = dma.done [#allocation4], 128
    $region29: #{tpu_custom_call.1} parent=1 // pred_fallthru
      _
    %166 = vsyncpa [#allocation3], 1
    %167 = vsyncpa [#allocation6], 1
    %168 = vsyncpa [#allocation4], 1

</llo_original>
